<compile_context>
chip_gen: v6e
topology: v6e:2x2x1
jax: 0.10.0
libtpu: 0.0.40
codegen_flags: <defaults>
</compile_context>

<pallas_src>
import math

import jax
import jax.numpy as jnp
from jax.experimental import pallas as pl
from jax.experimental.pallas import tpu as pltpu


def _round_up(n: int, m: int) -> int:
    return ((n + m - 1) // m) * m


# Conservative, generation-agnostic budgets (fits v5e/v6e 128 MiB and v7x 64 MiB).
_VMEM_WORKSET_BUDGET = 28 * 1024 * 1024   # target for the pipelined working set
_VMEM_LIMIT_BYTES = 48 * 1024 * 1024      # scoped-VMEM limit handed to Mosaic
_TM_CAP = 512                             # max batch-tile rows


def _fused_enc_kernel(x_ref, w0_ref, b0_ref, w1_ref, b1_ref, o_ref, acc_ref):
    # x_ref : (TM, TK)           f32 flattened NCHW input tile (cast to bf16 here)
    # w0_ref: (TK, LN_pad)       bf16 backbone "conv-as-matmul" weight K-slice
    # b0_ref: (1, LN_pad)        f32
    # w1_ref: (LN_pad, CL_pad)   bf16 ce_layer Linear weight (zero-padded)
    # b1_ref: (1, CL_pad)        f32
    # o_ref : (TM, CL_pad)       f32
    # acc_ref:(TM, LN_pad)       f32 accumulator scratch (resident across K axis)
    k = pl.program_id(1)

    @pl.when(k == 0)
    def _():
        acc_ref[...] = jnp.zeros_like(acc_ref)

    # Cast on the VPU right before the MXU; avoids a separate bf16 HBM pass.
    x = x_ref[...].astype(jnp.bfloat16)
    acc_ref[...] += jnp.dot(x, w0_ref[...], preferred_element_type=jnp.float32)

    @pl.when(k == pl.num_programs(1) - 1)
    def _():
        # self.model(x) output is (B, L, 1, 1) -> squeeze -> (B, L): acc already is.
        feat = jnp.maximum(acc_ref[...] + b0_ref[...], 0.0)          # ReLU
        code = jnp.dot(feat.astype(jnp.bfloat16), w1_ref[...],
                       preferred_element_type=jnp.float32)           # Linear
        o_ref[...] = jnp.tanh(code + b1_ref[...])                    # Tanh (EUP)


def _choose_tk(K: int, ln_pad: int, cl_pad: int) -> int:
    """Largest K-tile (multiple of 128) whose working set fits the VMEM budget,
    assuming the worst-case batch tile (_TM_CAP)."""
    k_pad = _round_up(K, 128)

    def workset(tk: int) -> int:
        return (2 * _TM_CAP * tk * 4          # x tiles, f32, double-buffered
                + 2 * tk * ln_pad * 2         # w0 tiles, bf16, double-buffered
                + ln_pad * cl_pad * 2         # w1, bf16, single-buffered
                + (ln_pad + cl_pad) * 4       # biases
                + _TM_CAP * ln_pad * 4        # f32 accumulator scratch
                + 2 * _TM_CAP * cl_pad * 4)   # output tiles, f32

    tk = min(k_pad, 8192)
    tk = _round_up(tk, 128)
    while tk > 128 and workset(tk) > _VMEM_WORKSET_BUDGET:
        tk = _round_up(tk // 2, 128)
    return tk


def _choose_tm(B: int) -> int:
    # >=2 batch tiles whenever B > 16 so v7x's two TensorCores both get work;
    # multiple of 16 so bf16 x tiles are natively sublane-packed.
    tm = _round_up(max(1, -(-B // 2)), 16)
    return min(_TM_CAP, tm)


def make_model_wrapper_enc(w0, b0, w1, b1):
    """Pad/cast the (static) parameters once and return a jitted forward(x)."""
    K, last_node = w0.shape
    code_length = w1.shape[1]

    # Lane-dense padding of the narrow feature dims (full 128-lane vregs,
    # unmasked stores on the output).
    ln_pad = _round_up(last_node, 128)
    cl_pad = _round_up(code_length, 128)

    TK = _choose_tk(K, ln_pad, cl_pad)
    K_pad = _round_up(K, TK)
    num_k = K_pad // TK

    # One-time parameter preparation (hoisted out of the per-call path).
    w0_p = jnp.zeros((K_pad, ln_pad), jnp.bfloat16).at[:K, :last_node].set(
        w0.astype(jnp.bfloat16))
    b0_p = jnp.zeros((1, ln_pad), jnp.float32).at[:, :last_node].set(
        b0.reshape(1, last_node).astype(jnp.float32))
    w1_p = jnp.zeros((ln_pad, cl_pad), jnp.bfloat16).at[:last_node, :code_length].set(
        w1.astype(jnp.bfloat16))
    b1_p = jnp.zeros((1, cl_pad), jnp.float32).at[:, :code_length].set(
        b1.reshape(1, code_length).astype(jnp.float32))

    def forward(x_nchw):
        B = x_nchw.shape[0]
        Kx = math.prod(x_nchw.shape[1:])
        assert Kx == K, f"expected flattened feature size {K}, got {Kx}"

        TM = _choose_tm(B)
        B_pad = _round_up(B, TM)
        num_m = B_pad // TM

        # Keep x in f32 on the wire; the kernel casts to bf16 in VMEM.
        x_flat = x_nchw.reshape(B, K).astype(jnp.float32)
        x_flat = jnp.pad(x_flat, ((0, B_pad - B), (0, K_pad - K)))

        out_padded = pl.pallas_call(
            _fused_enc_kernel,
            out_shape=jax.ShapeDtypeStruct((B_pad, cl_pad), jnp.float32),
            grid_spec=pltpu.PrefetchScalarGridSpec(
                num_scalar_prefetch=0,
                grid=(num_m, num_k),
                in_specs=[
                    # x: batch x K tiles
                    pl.BlockSpec((TM, TK), lambda i, k: (i, k)),
                    # w0: K tiles (double-buffered, but bounded by K-tiling)
                    pl.BlockSpec((TK, ln_pad), lambda i, k: (k, 0)),
                    # constant blocks: fetched once, single-buffered
                    pl.BlockSpec((1, ln_pad), lambda i, k: (0, 0),
                                 pipeline_mode=pl.Buffered(1)),
                    pl.BlockSpec((ln_pad, cl_pad), lambda i, k: (0, 0),
                                 pipeline_mode=pl.Buffered(1)),
                    pl.BlockSpec((1, cl_pad), lambda i, k: (0, 0),
                                 pipeline_mode=pl.Buffered(1)),
                ],
                out_specs=pl.BlockSpec((TM, cl_pad), lambda i, k: (i, 0)),
                scratch_shapes=[pltpu.VMEM((TM, ln_pad), jnp.float32)],
            ),
            compiler_params=pltpu.CompilerParams(
                # batch tiles parallel (dual-TC on v7x), K axis is a reduction
                dimension_semantics=("parallel", "arbitrary"),
                vmem_limit_bytes=_VMEM_LIMIT_BYTES,
            ),
        )(x_flat, w0_p, b0_p, w1_p, b1_p)

        return out_padded[:B, :code_length]

    return jax.jit(forward)


if __name__ == "__main__":
    # Small shapes consistent with the module.
    B, C, H, W = 2, 4, 16, 16
    last_node = 32      # backbone output size
    code_length = 16    # hash code length

    key = jax.random.PRNGKey(0)
    kx, k0, kb0, k1, kb1 = jax.random.split(key, 5)

    x = jax.random.normal(kx, (B, C, H, W), dtype=jnp.float32)

    # Deterministic parameter init (synthetic backbone; no checkpoint loading).
    K = C * H * W
    w0 = jax.random.normal(k0, (K, last_node), dtype=jnp.float32) * (1.0 / K) ** 0.5
    b0 = jax.random.normal(kb0, (last_node,), dtype=jnp.float32) * 0.01
    w1 = jax.random.normal(k1, (last_node, code_length), dtype=jnp.float32) * (1.0 / last_node) ** 0.5
    b1 = jax.random.normal(kb1, (code_length,), dtype=jnp.float32) * 0.01

    forward = make_model_wrapper_enc(w0, b0, w1, b1)
    out = forward(x)
    out = jax.block_until_ready(out)

    # Pure-JAX reference of the same math (matching the kernel's bf16 operand casts).
    x_b = x.reshape(B, K).astype(jnp.bfloat16)
    w0_b = w0.astype(jnp.bfloat16)
    feat_ref = jnp.maximum(
        jnp.dot(x_b, w0_b, preferred_element_type=jnp.float32) + b0, 0.0)
    code_ref = jnp.dot(feat_ref.astype(jnp.bfloat16), w1.astype(jnp.bfloat16),
                       preferred_element_type=jnp.float32)
    ref = jnp.tanh(code_ref + b1)

    assert out.shape == (B, code_length)
    assert jnp.allclose(out, ref, atol=5e-3, rtol=5e-3)

    print("KERNEL_OK")
</pallas_src>

<mosaic_0001>
module attributes {stable_mosaic.version = 11 : i64} {
  func.func @_fused_enc_kernel(%arg0: i32, %arg1: i32, %arg2: memref<16x1024xf32, #tpu.memory_space<vmem>>, %arg3: memref<1024x128xbf16, #tpu.memory_space<vmem>>, %arg4: memref<1x128xf32, #tpu.memory_space<vmem>>, %arg5: memref<128x128xbf16, #tpu.memory_space<vmem>>, %arg6: memref<1x128xf32, #tpu.memory_space<vmem>>, %arg7: memref<16x128xf32, #tpu.memory_space<vmem>>, %arg8: memref<16x128xf32, #tpu.memory_space<vmem>>) attributes {dimension_semantics = [#tpu.dimension_semantics<parallel>, #tpu.dimension_semantics<arbitrary>], iteration_bounds = array<i64: 1, 1>, scalar_prefetch = 0 : i64, scratch_operands = 1 : i64, tpu.core_type = #tpu.core_type<tc>, window_params = [{transform_indices = @transform_0, window_bounds = array<i64: 16, 1024>}, {transform_indices = @transform_1, window_bounds = array<i64: 1024, 128>}, {pipeline_mode = #tpu.pipeline_mode<synchronous>, transform_indices = @transform_2, window_bounds = array<i64: 1, 128>}, {pipeline_mode = #tpu.pipeline_mode<synchronous>, transform_indices = @transform_3, window_bounds = array<i64: 128, 128>}, {pipeline_mode = #tpu.pipeline_mode<synchronous>, transform_indices = @transform_4, window_bounds = array<i64: 1, 128>}, {transform_indices = @transform_5, window_bounds = array<i64: 16, 128>}]} {
    %c0_i32 = arith.constant 0 : i32
    %0 = arith.cmpi eq, %arg1, %c0_i32 : i32
    %1 = arith.extui %0 : i1 to i32
    %c0_i32_0 = arith.constant 0 : i32
    %2 = arith.cmpi ne, %1, %c0_i32_0 : i32
    scf.if %2 {
      %cst_10 = arith.constant 0.000000e+00 : f32
      %13 = vector.broadcast %cst_10 : f32 to vector<16x128xf32>
      %c0_11 = arith.constant 0 : index
      %c0_12 = arith.constant 0 : index
      %14 = vector.load %arg8[%c0_11, %c0_12] : memref<16x128xf32, #tpu.memory_space<vmem>>, vector<16x128xf32>
      tpu.vector_store %arg8[%c0_11, %c0_12], %13 {strides = array<i32>} : memref<16x128xf32, #tpu.memory_space<vmem>>, vector<16x128xf32>,
    } else {
    }
    %c0 = arith.constant 0 : index
    %c0_1 = arith.constant 0 : index
    %3 = vector.load %arg2[%c0, %c0_1] : memref<16x1024xf32, #tpu.memory_space<vmem>>, vector<16x1024xf32>
    %4 = arith.truncf %3 : vector<16x1024xf32> to vector<16x1024xbf16>
    %c0_2 = arith.constant 0 : index
    %c0_3 = arith.constant 0 : index
    %5 = vector.load %arg8[%c0_2, %c0_3] : memref<16x128xf32, #tpu.memory_space<vmem>>, vector<16x128xf32>
    %c0_4 = arith.constant 0 : index
    %c0_5 = arith.constant 0 : index
    %6 = vector.load %arg3[%c0_4, %c0_5] : memref<1024x128xbf16, #tpu.memory_space<vmem>>, vector<1024x128xbf16>
    %cst = arith.constant dense<0.000000e+00> : vector<16x128xf32>
    %7 = tpu.matmul %4, %6, %cst {dimension_numbers = #tpu.dot_dimension_numbers<[1], [0], [0], [1], [0, 0, 1, 1], [], []>} : vector<16x1024xbf16>, vector<1024x128xbf16>, vector<16x128xf32> -> vector<16x128xf32>
    %8 = arith.addf %5, %7 : vector<16x128xf32>
    %c0_6 = arith.constant 0 : index
    %c0_7 = arith.constant 0 : index
    %9 = vector.load %arg8[%c0_6, %c0_7] : memref<16x128xf32, #tpu.memory_space<vmem>>, vector<16x128xf32>
    tpu.vector_store %arg8[%c0_6, %c0_7], %8 {strides = array<i32>} : memref<16x128xf32, #tpu.memory_space<vmem>>, vector<16x128xf32>,
    %c0_i32_8 = arith.constant 0 : i32
    %10 = arith.cmpi eq, %arg1, %c0_i32_8 : i32
    %11 = arith.extui %10 : i1 to i32
    %c0_i32_9 = arith.constant 0 : i32
    %12 = arith.cmpi ne, %11, %c0_i32_9 : i32
    scf.if %12 {
      %c0_10 = arith.constant 0 : index
      %c0_11 = arith.constant 0 : index
      %13 = vector.load %arg8[%c0_10, %c0_11] : memref<16x128xf32, #tpu.memory_space<vmem>>, vector<16x128xf32>
      %c0_12 = arith.constant 0 : index
      %c0_13 = arith.constant 0 : index
      %14 = vector.load %arg4[%c0_12, %c0_13] : memref<1x128xf32, #tpu.memory_space<vmem>>, vector<1x128xf32>
      %15 = vector.broadcast %14 : vector<1x128xf32> to vector<16x128xf32>
      %16 = arith.addf %13, %15 : vector<16x128xf32>
      %cst_14 = arith.constant 0.000000e+00 : f32
      %17 = vector.broadcast %cst_14 : f32 to vector<16x128xf32>
      %18 = arith.maximumf %16, %17 : vector<16x128xf32>
      %19 = arith.truncf %18 : vector<16x128xf32> to vector<16x128xbf16>
      %c0_15 = arith.constant 0 : index
      %c0_16 = arith.constant 0 : index
      %20 = vector.load %arg5[%c0_15, %c0_16] : memref<128x128xbf16, #tpu.memory_space<vmem>>, vector<128x128xbf16>
      %cst_17 = arith.constant dense<0.000000e+00> : vector<16x128xf32>
      %21 = tpu.matmul %19, %20, %cst_17 {dimension_numbers = #tpu.dot_dimension_numbers<[1], [0], [0], [1], [0, 0, 1, 1], [], []>} : vector<16x128xbf16>, vector<128x128xbf16>, vector<16x128xf32> -> vector<16x128xf32>
      %c0_18 = arith.constant 0 : index
      %c0_19 = arith.constant 0 : index
      %22 = vector.load %arg6[%c0_18, %c0_19] : memref<1x128xf32, #tpu.memory_space<vmem>>, vector<1x128xf32>
      %23 = vector.broadcast %22 : vector<1x128xf32> to vector<16x128xf32>
      %24 = arith.addf %21, %23 : vector<16x128xf32>
      %25 = math.tanh %24 : vector<16x128xf32>
      %c0_20 = arith.constant 0 : index
      %c0_21 = arith.constant 0 : index
      %26 = vector.load %arg7[%c0_20, %c0_21] : memref<16x128xf32, #tpu.memory_space<vmem>>, vector<16x128xf32>
      tpu.vector_store %arg7[%c0_20, %c0_21], %25 {strides = array<i32>} : memref<16x128xf32, #tpu.memory_space<vmem>>, vector<16x128xf32>,
    } else {
    }
    return
  }
  func.func @transform_0(%arg0: i32, %arg1: i32) -> (i32, i32) {
    %c0_i32 = arith.constant 0 : i32
    return %arg0, %arg1 : i32, i32
  }
  func.func @transform_1(%arg0: i32, %arg1: i32) -> (i32, i32) {
    %c0_i32 = arith.constant 0 : i32
    %c0_i32_0 = arith.constant 0 : i32
    return %arg1, %c0_i32 : i32, i32
  }
  func.func @transform_2(%arg0: i32, %arg1: i32) -> (i32, i32) {
    %c0_i32 = arith.constant 0 : i32
    %c0_i32_0 = arith.constant 0 : i32
    %c0_i32_1 = arith.constant 0 : i32
    return %c0_i32, %c0_i32_0 : i32, i32
  }
  func.func @transform_3(%arg0: i32, %arg1: i32) -> (i32, i32) {
    %c0_i32 = arith.constant 0 : i32
    %c0_i32_0 = arith.constant 0 : i32
    %c0_i32_1 = arith.constant 0 : i32
    return %c0_i32, %c0_i32_0 : i32, i32
  }
  func.func @transform_4(%arg0: i32, %arg1: i32) -> (i32, i32) {
    %c0_i32 = arith.constant 0 : i32
    %c0_i32_0 = arith.constant 0 : i32
    %c0_i32_1 = arith.constant 0 : i32
    return %c0_i32, %c0_i32_0 : i32, i32
  }
  func.func @transform_5(%arg0: i32, %arg1: i32) -> (i32, i32) {
    %c0_i32 = arith.constant 0 : i32
    %c0_i32_0 = arith.constant 0 : i32
    return %arg0, %c0_i32 : i32, i32
  }
}

</mosaic_0001>

<llo_original>
// kernel: forward.1
$region0: #{forward.1}
  #allocation0 [shape = 'u32[]', space=smem, size = 0x4, offset = 0x4, fixed_abs, tag = 'smem constant byte address 0x4 - core index']
  #allocation1 [shape = 'u32[144,128]{1,0:T(1,128)}', space=vmem, size = 0x12000, scoped, tag = 'internal scratch']
  #allocation2 [shape = 'f32[16,128]{1,0:T(8,128)}', space=vmem, size = 0x2000, scoped, tag = 'scratch operand']
  %s0 = inlined_call_operand.vmem [shape: f32[16,1024], index: 0, kind: input, shape index: {}]
  %s1 = inlined_call_operand.hbm [shape: bf16[1024,128], index: 1, kind: input, shape index: {}]
  %s2 = inlined_call_operand.vmem [shape: f32[1,128], index: 2, kind: input, shape index: {}]
  %s3 = inlined_call_operand.vmem [shape: bf16[128,128], index: 3, kind: input, shape index: {}]
  %s4 = inlined_call_operand.vmem [shape: f32[1,128], index: 4, kind: input, shape index: {}]
  %s5 = inlined_call_operand.vmem [shape: f32[16,128], index: 5, kind: output, shape index: {}]
  %s6 = sld [smem:[#allocation0]]
  $region42: #{forward.1} parent=0
    _
  %s8 = ssub.s32 1, %s6
  %s9 = scalar_select 0, %s8, %s6
  $region1: #{forward.1} parent=0
    #allocation3 [shape = 'u8[262144]{0}', space=vmem, size = 0x40000, scoped, tag = 'input window, operand 1, single buffered']
    #allocation4 [shape = 's32[1]{0}', space=sflag, size = 0x4, scoped, tag = 'scoped memory for forward.1']
    %10 = vsyncpa [#allocation4], 0
    // Predicated region
    $region2: #{forward.1} parent=1 // pred_check
      _
    $region3: #{forward.1} parent=1 // pred_check_branch
      %12 = sbr.rel (0) target = $region5
    $region4: #{forward.1} parent=1 // pred_region
      _
    $region5: #{forward.1} parent=1 // pred_fallthru
      _
    // Predicated region
    $region6: #{forward.1} parent=1 // pred_check
      _
    $region7: #{forward.1} parent=1 // pred_check_branch
      %14 = sbr.rel (0) target = $region9
    $region8: #{forward.1} parent=1 // pred_region
      %s16 = ssub.s32 8192, 8192
      %17 = vsyncadd [#allocation4], %s16
      %s18 = sshll.u32 [#allocation3], 4
      %s19 = int_to_ptr.vmem [resolvable:$true] %s18
      %24 = dma.hbm_to_vmem [thread:$0]  %s1, 8192, %s19, [#allocation4], 64, 64, 4
    $region9: #{forward.1} parent=1 // pred_fallthru
      _
    // Predicated region
    $region10: #{forward.1} parent=1 // pred_check
      _
    $region11: #{forward.1} parent=1 // pred_check_branch
      %26 = sbr.rel (0) target = $region13
    $region12: #{forward.1} parent=1 // pred_region
      _
    $region13: #{forward.1} parent=1 // pred_fallthru
      _
    // Predicated region
    $region14: #{forward.1} parent=1 // pred_check
      _
    $region15: #{forward.1} parent=1 // pred_check_branch
      %28 = sbr.rel (0) target = $region17
    $region16: #{forward.1} parent=1 // pred_region
      _
    $region17: #{forward.1} parent=1 // pred_fallthru
      _
    // Predicated region
    $region18: #{forward.1} parent=1 // pred_check
      _
    $region19: #{forward.1} parent=1 // pred_check_branch
      %30 = sbr.rel (0) target = $region21
    $region20: #{forward.1} parent=1 // pred_region
      _
    $region21: #{forward.1} parent=1 // pred_fallthru
      _
    // Predicated region
    $region22: #{forward.1} parent=1 // pred_check
      _
    $region23: #{forward.1} parent=1 // pred_check_branch
      %32 = sbr.rel (0) target = $region25
    $region24: #{forward.1} parent=1 // pred_region
      %33 = dma.done [#allocation4], 8192
    $region25: #{forward.1} parent=1 // pred_fallthru
      _
    %p35 = scmp.eq.s32.totalorder 0, 0
    // Predicated region
    $region26: #{forward.1} parent=1 // pred_check
      %p36 = pneg %p35
    $region27: #{forward.1} parent=1 // pred_check_branch
      %38 = sbr.rel (%p36) target = $region29
    $region28: #{forward.1} parent=1 // pred_region
      %39 = vst [vmem:[#allocation2] sm:$0xff] 0.0
      %40 = vst [vmem:[#allocation2 + $0x8] sm:$0xff] 0.0
    $region29: #{forward.1} parent=1 // pred_fallthru
      _
    %v41 = vld [vmem:[%s0] sm:$0xff]
    %v42 = vld [vmem:[%s0 + $0x8] sm:$0xff]
    %v43 = vld [vmem:[%s0 + $0x10] sm:$0xff]
    %v44 = vld [vmem:[%s0 + $0x18] sm:$0xff]
    %v45 = vld [vmem:[%s0 + $0x20] sm:$0xff]
    %v46 = vld [vmem:[%s0 + $0x28] sm:$0xff]
    %v47 = vld [vmem:[%s0 + $0x30] sm:$0xff]
    %v48 = vld [vmem:[%s0 + $0x38] sm:$0xff]
    %v49 = vld [vmem:[%s0 + $0x40] sm:$0xff]
    %v50 = vld [vmem:[%s0 + $0x48] sm:$0xff]
    %v51 = vld [vmem:[%s0 + $0x50] sm:$0xff]
    %v52 = vld [vmem:[%s0 + $0x58] sm:$0xff]
    %v53 = vld [vmem:[%s0 + $0x60] sm:$0xff]
    %v54 = vld [vmem:[%s0 + $0x68] sm:$0xff]
    %v55 = vld [vmem:[%s0 + $0x70] sm:$0xff]
    %v56 = vld [vmem:[%s0 + $0x78] sm:$0xff]
    %v57 = vpack.c.bf16 %v49, %v41
    %v58 = vpack.c.bf16 %v50, %v42
    %v59 = vpack.c.bf16 %v51, %v43
    %v60 = vpack.c.bf16 %v52, %v44
    %v61 = vpack.c.bf16 %v53, %v45
    %v62 = vpack.c.bf16 %v54, %v46
    %v63 = vpack.c.bf16 %v55, %v47
    %v64 = vpack.c.bf16 %v56, %v48
    %v65 = vld [vmem:[#allocation2] sm:$0xff]
    %v66 = vld [vmem:[#allocation2 + $0x8] sm:$0xff]
    %v67 = vld [vmem:[#allocation3] sm:$0xf]
    %v68 = vld [vmem:[#allocation3 + $0x4] sm:$0xf]
    %v69 = vld [vmem:[#allocation3 + $0x8] sm:$0xf]
    %v70 = vld [vmem:[#allocation3 + $0xc] sm:$0xf]
    %v71 = vld [vmem:[#allocation3 + $0x10] sm:$0xf]
    %v72 = vld [vmem:[#allocation3 + $0x14] sm:$0xf]
    %v73 = vld [vmem:[#allocation3 + $0x18] sm:$0xf]
    %v74 = vld [vmem:[#allocation3 + $0x1c] sm:$0xf]
    %v75 = vld [vmem:[#allocation3 + $0x20] sm:$0xf]
    %v76 = vld [vmem:[#allocation3 + $0x24] sm:$0xf]
    %v77 = vld [vmem:[#allocation3 + $0x28] sm:$0xf]
    %v78 = vld [vmem:[#allocation3 + $0x2c] sm:$0xf]
    %v79 = vld [vmem:[#allocation3 + $0x30] sm:$0xf]
    %v80 = vld [vmem:[#allocation3 + $0x34] sm:$0xf]
    %v81 = vld [vmem:[#allocation3 + $0x38] sm:$0xf]
    %v82 = vld [vmem:[#allocation3 + $0x3c] sm:$0xf]
    %v83 = vld [vmem:[#allocation3 + $0x40] sm:$0xf]
    %v84 = vld [vmem:[#allocation3 + $0x44] sm:$0xf]
    %v85 = vld [vmem:[#allocation3 + $0x48] sm:$0xf]
    %v86 = vld [vmem:[#allocation3 + $0x4c] sm:$0xf]
    %v87 = vld [vmem:[#allocation3 + $0x50] sm:$0xf]
    %v88 = vld [vmem:[#allocation3 + $0x54] sm:$0xf]
    %v89 = vld [vmem:[#allocation3 + $0x58] sm:$0xf]
    %v90 = vld [vmem:[#allocation3 + $0x5c] sm:$0xf]
    %v91 = vld [vmem:[#allocation3 + $0x60] sm:$0xf]
    %v92 = vld [vmem:[#allocation3 + $0x64] sm:$0xf]
    %v93 = vld [vmem:[#allocation3 + $0x68] sm:$0xf]
    %v94 = vld [vmem:[#allocation3 + $0x6c] sm:$0xf]
    %v95 = vld [vmem:[#allocation3 + $0x70] sm:$0xf]
    %v96 = vld [vmem:[#allocation3 + $0x74] sm:$0xf]
    %v97 = vld [vmem:[#allocation3 + $0x78] sm:$0xf]
    %v98 = vld [vmem:[#allocation3 + $0x7c] sm:$0xf]
    %v99 = vld [vmem:[#allocation3 + $0x80] sm:$0xf]
    %v100 = vld [vmem:[#allocation3 + $0x84] sm:$0xf]
    %v101 = vld [vmem:[#allocation3 + $0x88] sm:$0xf]
    %v102 = vld [vmem:[#allocation3 + $0x8c] sm:$0xf]
    %v103 = vld [vmem:[#allocation3 + $0x90] sm:$0xf]
    %v104 = vld [vmem:[#allocation3 + $0x94] sm:$0xf]
    %v105 = vld [vmem:[#allocation3 + $0x98] sm:$0xf]
    %v106 = vld [vmem:[#allocation3 + $0x9c] sm:$0xf]
    %v107 = vld [vmem:[#allocation3 + $0xa0] sm:$0xf]
    %v108 = vld [vmem:[#allocation3 + $0xa4] sm:$0xf]
    %v109 = vld [vmem:[#allocation3 + $0xa8] sm:$0xf]
    %v110 = vld [vmem:[#allocation3 + $0xac] sm:$0xf]
    %v111 = vld [vmem:[#allocation3 + $0xb0] sm:$0xf]
    %v112 = vld [vmem:[#allocation3 + $0xb4] sm:$0xf]
    %v113 = vld [vmem:[#allocation3 + $0xb8] sm:$0xf]
    %v114 = vld [vmem:[#allocation3 + $0xbc] sm:$0xf]
    %v115 = vld [vmem:[#allocation3 + $0xc0] sm:$0xf]
    %v116 = vld [vmem:[#allocation3 + $0xc4] sm:$0xf]
    %v117 = vld [vmem:[#allocation3 + $0xc8] sm:$0xf]
    %v118 = vld [vmem:[#allocation3 + $0xcc] sm:$0xf]
    %v119 = vld [vmem:[#allocation3 + $0xd0] sm:$0xf]
    %v120 = vld [vmem:[#allocation3 + $0xd4] sm:$0xf]
    %v121 = vld [vmem:[#allocation3 + $0xd8] sm:$0xf]
    %v122 = vld [vmem:[#allocation3 + $0xdc] sm:$0xf]
    %v123 = vld [vmem:[#allocation3 + $0xe0] sm:$0xf]
    %v124 = vld [vmem:[#allocation3 + $0xe4] sm:$0xf]
    %v125 = vld [vmem:[#allocation3 + $0xe8] sm:$0xf]
    %v126 = vld [vmem:[#allocation3 + $0xec] sm:$0xf]
    %v127 = vld [vmem:[#allocation3 + $0xf0] sm:$0xf]
    %v128 = vld [vmem:[#allocation3 + $0xf4] sm:$0xf]
    %v129 = vld [vmem:[#allocation3 + $0xf8] sm:$0xf]
    %v130 = vld [vmem:[#allocation3 + $0xfc] sm:$0xf]
    %v131 = vld [vmem:[#allocation3 + $0x100] sm:$0xf]
    %v132 = vld [vmem:[#allocation3 + $0x104] sm:$0xf]
    %v133 = vld [vmem:[#allocation3 + $0x108] sm:$0xf]
    %v134 = vld [vmem:[#allocation3 + $0x10c] sm:$0xf]
    %v135 = vld [vmem:[#allocation3 + $0x110] sm:$0xf]
    %v136 = vld [vmem:[#allocation3 + $0x114] sm:$0xf]
    %v137 = vld [vmem:[#allocation3 + $0x118] sm:$0xf]
    %v138 = vld [vmem:[#allocation3 + $0x11c] sm:$0xf]
    %v139 = vld [vmem:[#allocation3 + $0x120] sm:$0xf]
    %v140 = vld [vmem:[#allocation3 + $0x124] sm:$0xf]
    %v141 = vld [vmem:[#allocation3 + $0x128] sm:$0xf]
    %v142 = vld [vmem:[#allocation3 + $0x12c] sm:$0xf]
    %v143 = vld [vmem:[#allocation3 + $0x130] sm:$0xf]
    %v144 = vld [vmem:[#allocation3 + $0x134] sm:$0xf]
    %v145 = vld [vmem:[#allocation3 + $0x138] sm:$0xf]
    %v146 = vld [vmem:[#allocation3 + $0x13c] sm:$0xf]
    %v147 = vld [vmem:[#allocation3 + $0x140] sm:$0xf]
    %v148 = vld [vmem:[#allocation3 + $0x144] sm:$0xf]
    %v149 = vld [vmem:[#allocation3 + $0x148] sm:$0xf]
    %v150 = vld [vmem:[#allocation3 + $0x14c] sm:$0xf]
    %v151 = vld [vmem:[#allocation3 + $0x150] sm:$0xf]
    %v152 = vld [vmem:[#allocation3 + $0x154] sm:$0xf]
    %v153 = vld [vmem:[#allocation3 + $0x158] sm:$0xf]
    %v154 = vld [vmem:[#allocation3 + $0x15c] sm:$0xf]
    %v155 = vld [vmem:[#allocation3 + $0x160] sm:$0xf]
    %v156 = vld [vmem:[#allocation3 + $0x164] sm:$0xf]
    %v157 = vld [vmem:[#allocation3 + $0x168] sm:$0xf]
    %v158 = vld [vmem:[#allocation3 + $0x16c] sm:$0xf]
    %v159 = vld [vmem:[#allocation3 + $0x170] sm:$0xf]
    %v160 = vld [vmem:[#allocation3 + $0x174] sm:$0xf]
    %v161 = vld [vmem:[#allocation3 + $0x178] sm:$0xf]
    %v162 = vld [vmem:[#allocation3 + $0x17c] sm:$0xf]
    %v163 = vld [vmem:[#allocation3 + $0x180] sm:$0xf]
    %v164 = vld [vmem:[#allocation3 + $0x184] sm:$0xf]
    %v165 = vld [vmem:[#allocation3 + $0x188] sm:$0xf]
    %v166 = vld [vmem:[#allocation3 + $0x18c] sm:$0xf]
    %v167 = vld [vmem:[#allocation3 + $0x190] sm:$0xf]
    %v168 = vld [vmem:[#allocation3 + $0x194] sm:$0xf]
    %v169 = vld [vmem:[#allocation3 + $0x198] sm:$0xf]
    %v170 = vld [vmem:[#allocation3 + $0x19c] sm:$0xf]
    %v171 = vld [vmem:[#allocation3 + $0x1a0] sm:$0xf]
    %v172 = vld [vmem:[#allocation3 + $0x1a4] sm:$0xf]
    %v173 = vld [vmem:[#allocation3 + $0x1a8] sm:$0xf]
    %v174 = vld [vmem:[#allocation3 + $0x1ac] sm:$0xf]
    %v175 = vld [vmem:[#allocation3 + $0x1b0] sm:$0xf]
    %v176 = vld [vmem:[#allocation3 + $0x1b4] sm:$0xf]
    %v177 = vld [vmem:[#allocation3 + $0x1b8] sm:$0xf]
    %v178 = vld [vmem:[#allocation3 + $0x1bc] sm:$0xf]
    %v179 = vld [vmem:[#allocation3 + $0x1c0] sm:$0xf]
    %v180 = vld [vmem:[#allocation3 + $0x1c4] sm:$0xf]
    %v181 = vld [vmem:[#allocation3 + $0x1c8] sm:$0xf]
    %v182 = vld [vmem:[#allocation3 + $0x1cc] sm:$0xf]
    %v183 = vld [vmem:[#allocation3 + $0x1d0] sm:$0xf]
    %v184 = vld [vmem:[#allocation3 + $0x1d4] sm:$0xf]
    %v185 = vld [vmem:[#allocation3 + $0x1d8] sm:$0xf]
    %v186 = vld [vmem:[#allocation3 + $0x1dc] sm:$0xf]
    %v187 = vld [vmem:[#allocation3 + $0x1e0] sm:$0xf]
    %v188 = vld [vmem:[#allocation3 + $0x1e4] sm:$0xf]
    %v189 = vld [vmem:[#allocation3 + $0x1e8] sm:$0xf]
    %v190 = vld [vmem:[#allocation3 + $0x1ec] sm:$0xf]
    %v191 = vld [vmem:[#allocation3 + $0x1f0] sm:$0xf]
    %v192 = vld [vmem:[#allocation3 + $0x1f4] sm:$0xf]
    %v193 = vld [vmem:[#allocation3 + $0x1f8] sm:$0xf]
    %v194 = vld [vmem:[#allocation3 + $0x1fc] sm:$0xf]
    %v323 = vunpack.c.l.b16 %v67
    %v324 = vunpack.c.l.b16 %v68
    %v325 = vunpack.c.l.b16 %v69
    %v326 = vunpack.c.l.b16 %v70
    %v327 = vunpack.c.l.b16 %v71
    %v328 = vunpack.c.l.b16 %v72
    %v329 = vunpack.c.l.b16 %v73
    %v330 = vunpack.c.l.b16 %v74
    %v331 = vunpack.c.l.b16 %v75
    %v332 = vunpack.c.l.b16 %v76
    %v333 = vunpack.c.l.b16 %v77
    %v334 = vunpack.c.l.b16 %v78
    %v335 = vunpack.c.l.b16 %v79
    %v336 = vunpack.c.l.b16 %v80
    %v337 = vunpack.c.l.b16 %v81
    %v338 = vunpack.c.l.b16 %v82
    %v339 = vunpack.c.l.b16 %v83
    %v340 = vunpack.c.l.b16 %v84
    %v341 = vunpack.c.l.b16 %v85
    %v342 = vunpack.c.l.b16 %v86
    %v343 = vunpack.c.l.b16 %v87
    %v344 = vunpack.c.l.b16 %v88
    %v345 = vunpack.c.l.b16 %v89
    %v346 = vunpack.c.l.b16 %v90
    %v347 = vunpack.c.l.b16 %v91
    %v348 = vunpack.c.l.b16 %v92
    %v349 = vunpack.c.l.b16 %v93
    %v350 = vunpack.c.l.b16 %v94
    %v351 = vunpack.c.l.b16 %v95
    %v352 = vunpack.c.l.b16 %v96
    %v353 = vunpack.c.l.b16 %v97
    %v354 = vunpack.c.l.b16 %v98
    %v355 = vunpack.c.l.b16 %v99
    %v356 = vunpack.c.l.b16 %v100
    %v357 = vunpack.c.l.b16 %v101
    %v358 = vunpack.c.l.b16 %v102
    %v359 = vunpack.c.l.b16 %v103
    %v360 = vunpack.c.l.b16 %v104
    %v361 = vunpack.c.l.b16 %v105
    %v362 = vunpack.c.l.b16 %v106
    %v363 = vunpack.c.l.b16 %v107
    %v364 = vunpack.c.l.b16 %v108
    %v365 = vunpack.c.l.b16 %v109
    %v366 = vunpack.c.l.b16 %v110
    %v367 = vunpack.c.l.b16 %v111
    %v368 = vunpack.c.l.b16 %v112
    %v369 = vunpack.c.l.b16 %v113
    %v370 = vunpack.c.l.b16 %v114
    %v371 = vunpack.c.l.b16 %v115
    %v372 = vunpack.c.l.b16 %v116
    %v373 = vunpack.c.l.b16 %v117
    %v374 = vunpack.c.l.b16 %v118
    %v375 = vunpack.c.l.b16 %v119
    %v376 = vunpack.c.l.b16 %v120
    %v377 = vunpack.c.l.b16 %v121
    %v378 = vunpack.c.l.b16 %v122
    %v379 = vunpack.c.l.b16 %v123
    %v380 = vunpack.c.l.b16 %v124
    %v381 = vunpack.c.l.b16 %v125
    %v382 = vunpack.c.l.b16 %v126
    %v383 = vunpack.c.l.b16 %v127
    %v384 = vunpack.c.l.b16 %v128
    %v385 = vunpack.c.l.b16 %v129
    %v386 = vunpack.c.l.b16 %v130
    %v387 = vunpack.c.l.b16 %v131
    %v388 = vunpack.c.l.b16 %v132
    %v389 = vunpack.c.l.b16 %v133
    %v390 = vunpack.c.l.b16 %v134
    %v391 = vunpack.c.l.b16 %v135
    %v392 = vunpack.c.l.b16 %v136
    %v393 = vunpack.c.l.b16 %v137
    %v394 = vunpack.c.l.b16 %v138
    %v395 = vunpack.c.l.b16 %v139
    %v396 = vunpack.c.l.b16 %v140
    %v397 = vunpack.c.l.b16 %v141
    %v398 = vunpack.c.l.b16 %v142
    %v399 = vunpack.c.l.b16 %v143
    %v400 = vunpack.c.l.b16 %v144
    %v401 = vunpack.c.l.b16 %v145
    %v402 = vunpack.c.l.b16 %v146
    %v403 = vunpack.c.l.b16 %v147
    %v404 = vunpack.c.l.b16 %v148
    %v405 = vunpack.c.l.b16 %v149
    %v406 = vunpack.c.l.b16 %v150
    %v407 = vunpack.c.l.b16 %v151
    %v408 = vunpack.c.l.b16 %v152
    %v409 = vunpack.c.l.b16 %v153
    %v410 = vunpack.c.l.b16 %v154
    %v411 = vunpack.c.l.b16 %v155
    %v412 = vunpack.c.l.b16 %v156
    %v413 = vunpack.c.l.b16 %v157
    %v414 = vunpack.c.l.b16 %v158
    %v415 = vunpack.c.l.b16 %v159
    %v416 = vunpack.c.l.b16 %v160
    %v417 = vunpack.c.l.b16 %v161
    %v418 = vunpack.c.l.b16 %v162
    %v419 = vunpack.c.l.b16 %v163
    %v420 = vunpack.c.l.b16 %v164
    %v421 = vunpack.c.l.b16 %v165
    %v422 = vunpack.c.l.b16 %v166
    %v423 = vunpack.c.l.b16 %v167
    %v424 = vunpack.c.l.b16 %v168
    %v425 = vunpack.c.l.b16 %v169
    %v426 = vunpack.c.l.b16 %v170
    %v427 = vunpack.c.l.b16 %v171
    %v428 = vunpack.c.l.b16 %v172
    %v429 = vunpack.c.l.b16 %v173
    %v430 = vunpack.c.l.b16 %v174
    %v431 = vunpack.c.l.b16 %v175
    %v432 = vunpack.c.l.b16 %v176
    %v433 = vunpack.c.l.b16 %v177
    %v434 = vunpack.c.l.b16 %v178
    %v435 = vunpack.c.l.b16 %v179
    %v436 = vunpack.c.l.b16 %v180
    %v437 = vunpack.c.l.b16 %v181
    %v438 = vunpack.c.l.b16 %v182
    %v439 = vunpack.c.l.b16 %v183
    %v440 = vunpack.c.l.b16 %v184
    %v441 = vunpack.c.l.b16 %v185
    %v442 = vunpack.c.l.b16 %v186
    %v443 = vunpack.c.l.b16 %v187
    %v444 = vunpack.c.l.b16 %v188
    %v445 = vunpack.c.l.b16 %v189
    %v446 = vunpack.c.l.b16 %v190
    %v447 = vunpack.c.l.b16 %v191
    %v448 = vunpack.c.l.b16 %v192
    %v449 = vunpack.c.l.b16 %v193
    %v450 = vunpack.c.l.b16 %v194
    %v451 = vpack.c.b16 %v324, %v323
    %v452 = vpack.c.b16 %v326, %v325
    %v453 = vpack.c.b16 %v328, %v327
    %v454 = vpack.c.b16 %v330, %v329
    %v455 = vpack.c.b16 %v332, %v331
    %v456 = vpack.c.b16 %v334, %v333
    %v457 = vpack.c.b16 %v336, %v335
    %v458 = vpack.c.b16 %v338, %v337
    %v459 = vpack.c.b16 %v340, %v339
    %v460 = vpack.c.b16 %v342, %v341
    %v461 = vpack.c.b16 %v344, %v343
    %v462 = vpack.c.b16 %v346, %v345
    %v463 = vpack.c.b16 %v348, %v347
    %v464 = vpack.c.b16 %v350, %v349
    %v465 = vpack.c.b16 %v352, %v351
    %v466 = vpack.c.b16 %v354, %v353
    %v467 = vpack.c.b16 %v356, %v355
    %v468 = vpack.c.b16 %v358, %v357
    %v469 = vpack.c.b16 %v360, %v359
    %v470 = vpack.c.b16 %v362, %v361
    %v471 = vpack.c.b16 %v364, %v363
    %v472 = vpack.c.b16 %v366, %v365
    %v473 = vpack.c.b16 %v368, %v367
    %v474 = vpack.c.b16 %v370, %v369
    %v475 = vpack.c.b16 %v372, %v371
    %v476 = vpack.c.b16 %v374, %v373
    %v477 = vpack.c.b16 %v376, %v375
    %v478 = vpack.c.b16 %v378, %v377
    %v479 = vpack.c.b16 %v380, %v379
    %v480 = vpack.c.b16 %v382, %v381
    %v481 = vpack.c.b16 %v384, %v383
    %v482 = vpack.c.b16 %v386, %v385
    %v483 = vpack.c.b16 %v388, %v387
    %v484 = vpack.c.b16 %v390, %v389
    %v485 = vpack.c.b16 %v392, %v391
    %v486 = vpack.c.b16 %v394, %v393
    %v487 = vpack.c.b16 %v396, %v395
    %v488 = vpack.c.b16 %v398, %v397
    %v489 = vpack.c.b16 %v400, %v399
    %v490 = vpack.c.b16 %v402, %v401
    %v491 = vpack.c.b16 %v404, %v403
    %v492 = vpack.c.b16 %v406, %v405
    %v493 = vpack.c.b16 %v408, %v407
    %v494 = vpack.c.b16 %v410, %v409
    %v495 = vpack.c.b16 %v412, %v411
    %v496 = vpack.c.b16 %v414, %v413
    %v497 = vpack.c.b16 %v416, %v415
    %v498 = vpack.c.b16 %v418, %v417
    %v499 = vpack.c.b16 %v420, %v419
    %v500 = vpack.c.b16 %v422, %v421
    %v501 = vpack.c.b16 %v424, %v423
    %v502 = vpack.c.b16 %v426, %v425
    %v503 = vpack.c.b16 %v428, %v427
    %v504 = vpack.c.b16 %v430, %v429
    %v505 = vpack.c.b16 %v432, %v431
    %v506 = vpack.c.b16 %v434, %v433
    %v507 = vpack.c.b16 %v436, %v435
    %v508 = vpack.c.b16 %v438, %v437
    %v509 = vpack.c.b16 %v440, %v439
    %v510 = vpack.c.b16 %v442, %v441
    %v511 = vpack.c.b16 %v444, %v443
    %v512 = vpack.c.b16 %v446, %v445
    %v513 = vpack.c.b16 %v448, %v447
    %v514 = vpack.c.b16 %v450, %v449
    %579 = vmatprep.subr.bf16.mxu0 0
    %580 = vmatpush1.bf16.msra.mxu0 %v458
    %581 = vmatprep.subr.bf16.mxu0 0
    %582 = vmatpush1.bf16.msra.mxu0 %v457
    %583 = vmatprep.subr.bf16.mxu0 0
    %584 = vmatpush1.bf16.msra.mxu0 %v456
    %585 = vmatprep.subr.bf16.mxu0 0
    %586 = vmatpush1.bf16.msra.mxu0 %v455
    %587 = vmatprep.subr.bf16.mxu0 0
    %588 = vmatpush1.bf16.msra.mxu0 %v454
    %589 = vmatprep.subr.bf16.mxu0 0
    %590 = vmatpush1.bf16.msra.mxu0 %v453
    %591 = vmatprep.subr.bf16.mxu0 0
    %592 = vmatpush1.bf16.msra.mxu0 %v452
    %593 = vmatprep.subr.bf16.mxu0 0
    %594 = vmatpush1.bf16.msra.mxu0 %v451
    %595 = vmatprep.subr.bf16.mxu0 0
    %596 = vmatpush2.bf16.msra.mxu0 %v466
    %597 = vmatprep.subr.bf16.mxu0 0
    %598 = vmatpush2.bf16.msra.mxu0 %v465
    %599 = vmatprep.subr.bf16.mxu0 0
    %600 = vmatpush2.bf16.msra.mxu0 %v464
    %601 = vmatprep.subr.bf16.mxu0 0
    %602 = vmatpush2.bf16.msra.mxu0 %v463
    %603 = vmatprep.subr.bf16.mxu0 0
    %604 = vmatpush2.bf16.msra.mxu0 %v462
    %605 = vmatprep.subr.bf16.mxu0 0
    %606 = vmatpush2.bf16.msra.mxu0 %v461
    %607 = vmatprep.subr.bf16.mxu0 0
    %608 = vmatpush2.bf16.msra.mxu0 %v460
    %609 = vmatprep.subr.bf16.mxu0 0
    %610 = vmatpush2.bf16.msra.mxu0 %v459
    %611 = vmatprep.mubr.bf16.mxu0 %v58
    %612 = vmatmul.mubr.bf16.gmra.mxu0 %v57
    %v613 = vpop.f32.mrf.mxu0
    %v614 = vadd.f32 0.0, %v613
    %v615 = vpop.f32.mrf.mxu0
    %v616 = vpop.f32.mrf.mxu0
    %v617 = vadd.f32 0.0, %v616
    %v618 = vpop.f32.mrf.mxu0
    %619 = vdwg.mxu0
    %620 = vmatprep.subr.bf16.mxu0 0
    %621 = vmatpush1.bf16.msra.mxu0 %v474
    %622 = vmatprep.subr.bf16.mxu0 0
    %623 = vmatpush1.bf16.msra.mxu0 %v473
    %624 = vmatprep.subr.bf16.mxu0 0
    %625 = vmatpush1.bf16.msra.mxu0 %v472
    %626 = vmatprep.subr.bf16.mxu0 0
    %627 = vmatpush1.bf16.msra.mxu0 %v471
    %628 = vmatprep.subr.bf16.mxu0 0
    %629 = vmatpush1.bf16.msra.mxu0 %v470
    %630 = vmatprep.subr.bf16.mxu0 0
    %631 = vmatpush1.bf16.msra.mxu0 %v469
    %632 = vmatprep.subr.bf16.mxu0 0
    %633 = vmatpush1.bf16.msra.mxu0 %v468
    %634 = vmatprep.subr.bf16.mxu0 0
    %635 = vmatpush1.bf16.msra.mxu0 %v467
    %636 = vmatprep.subr.bf16.mxu0 0
    %637 = vmatpush2.bf16.msra.mxu0 %v482
    %638 = vmatprep.subr.bf16.mxu0 0
    %639 = vmatpush2.bf16.msra.mxu0 %v481
    %640 = vmatprep.subr.bf16.mxu0 0
    %641 = vmatpush2.bf16.msra.mxu0 %v480
    %642 = vmatprep.subr.bf16.mxu0 0
    %643 = vmatpush2.bf16.msra.mxu0 %v479
    %644 = vmatprep.subr.bf16.mxu0 0
    %645 = vmatpush2.bf16.msra.mxu0 %v478
    %646 = vmatprep.subr.bf16.mxu0 0
    %647 = vmatpush2.bf16.msra.mxu0 %v477
    %648 = vmatprep.subr.bf16.mxu0 0
    %649 = vmatpush2.bf16.msra.mxu0 %v476
    %650 = vmatprep.subr.bf16.mxu0 0
    %651 = vmatpush2.bf16.msra.mxu0 %v475
    %652 = vmatprep.mubr.bf16.mxu0 %v60
    %653 = vmatmul.mubr.bf16.gmra.mxu0 %v59
    %v654 = vpop.f32.mrf.mxu0
    %v655 = vadd.f32 %v614, %v654
    %v656 = vpop.f32.mrf.mxu0
    %v657 = vpop.f32.mrf.mxu0
    %v658 = vadd.f32 %v617, %v657
    %v659 = vpop.f32.mrf.mxu0
    %660 = vdwg.mxu0
    %661 = vmatprep.subr.bf16.mxu0 0
    %662 = vmatpush1.bf16.msra.mxu0 %v490
    %663 = vmatprep.subr.bf16.mxu0 0
    %664 = vmatpush1.bf16.msra.mxu0 %v489
    %665 = vmatprep.subr.bf16.mxu0 0
    %666 = vmatpush1.bf16.msra.mxu0 %v488
    %667 = vmatprep.subr.bf16.mxu0 0
    %668 = vmatpush1.bf16.msra.mxu0 %v487
    %669 = vmatprep.subr.bf16.mxu0 0
    %670 = vmatpush1.bf16.msra.mxu0 %v486
    %671 = vmatprep.subr.bf16.mxu0 0
    %672 = vmatpush1.bf16.msra.mxu0 %v485
    %673 = vmatprep.subr.bf16.mxu0 0
    %674 = vmatpush1.bf16.msra.mxu0 %v484
    %675 = vmatprep.subr.bf16.mxu0 0
    %676 = vmatpush1.bf16.msra.mxu0 %v483
    %677 = vmatprep.subr.bf16.mxu0 0
    %678 = vmatpush2.bf16.msra.mxu0 %v498
    %679 = vmatprep.subr.bf16.mxu0 0
    %680 = vmatpush2.bf16.msra.mxu0 %v497
    %681 = vmatprep.subr.bf16.mxu0 0
    %682 = vmatpush2.bf16.msra.mxu0 %v496
    %683 = vmatprep.subr.bf16.mxu0 0
    %684 = vmatpush2.bf16.msra.mxu0 %v495
    %685 = vmatprep.subr.bf16.mxu0 0
    %686 = vmatpush2.bf16.msra.mxu0 %v494
    %687 = vmatprep.subr.bf16.mxu0 0
    %688 = vmatpush2.bf16.msra.mxu0 %v493
    %689 = vmatprep.subr.bf16.mxu0 0
    %690 = vmatpush2.bf16.msra.mxu0 %v492
    %691 = vmatprep.subr.bf16.mxu0 0
    %692 = vmatpush2.bf16.msra.mxu0 %v491
    %693 = vmatprep.mubr.bf16.mxu0 %v62
    %694 = vmatmul.mubr.bf16.gmra.mxu0 %v61
    %v695 = vpop.f32.mrf.mxu0
    %v696 = vadd.f32 %v655, %v695
    %v697 = vpop.f32.mrf.mxu0
    %v698 = vpop.f32.mrf.mxu0
    %v699 = vadd.f32 %v658, %v698
    %v700 = vpop.f32.mrf.mxu0
    %701 = vdwg.mxu0
    %702 = vmatprep.subr.bf16.mxu0 0
    %703 = vmatpush1.bf16.msra.mxu0 %v506
    %704 = vmatprep.subr.bf16.mxu0 0
    %705 = vmatpush1.bf16.msra.mxu0 %v505
    %706 = vmatprep.subr.bf16.mxu0 0
    %707 = vmatpush1.bf16.msra.mxu0 %v504
    %708 = vmatprep.subr.bf16.mxu0 0
    %709 = vmatpush1.bf16.msra.mxu0 %v503
    %710 = vmatprep.subr.bf16.mxu0 0
    %711 = vmatpush1.bf16.msra.mxu0 %v502
    %712 = vmatprep.subr.bf16.mxu0 0
    %713 = vmatpush1.bf16.msra.mxu0 %v501
    %714 = vmatprep.subr.bf16.mxu0 0
    %715 = vmatpush1.bf16.msra.mxu0 %v500
    %716 = vmatprep.subr.bf16.mxu0 0
    %717 = vmatpush1.bf16.msra.mxu0 %v499
    %718 = vmatprep.subr.bf16.mxu0 0
    %719 = vmatpush2.bf16.msra.mxu0 %v514
    %720 = vmatprep.subr.bf16.mxu0 0
    %721 = vmatpush2.bf16.msra.mxu0 %v513
    %722 = vmatprep.subr.bf16.mxu0 0
    %723 = vmatpush2.bf16.msra.mxu0 %v512
    %724 = vmatprep.subr.bf16.mxu0 0
    %725 = vmatpush2.bf16.msra.mxu0 %v511
    %726 = vmatprep.subr.bf16.mxu0 0
    %727 = vmatpush2.bf16.msra.mxu0 %v510
    %728 = vmatprep.subr.bf16.mxu0 0
    %729 = vmatpush2.bf16.msra.mxu0 %v509
    %730 = vmatprep.subr.bf16.mxu0 0
    %731 = vmatpush2.bf16.msra.mxu0 %v508
    %732 = vmatprep.subr.bf16.mxu0 0
    %733 = vmatpush2.bf16.msra.mxu0 %v507
    %734 = vmatprep.mubr.bf16.mxu0 %v64
    %735 = vmatmul.mubr.bf16.gmra.mxu0 %v63
    %v736 = vpop.f32.mrf.mxu0
    %v737 = vadd.f32 %v696, %v736
    %v738 = vpop.f32.mrf.mxu0
    %v739 = vpop.f32.mrf.mxu0
    %v740 = vadd.f32 %v699, %v739
    %v741 = vpop.f32.mrf.mxu0
    %742 = vdwg.mxu0
    %v743 = vadd.f32 %v65, %v737
    %v744 = vadd.f32 %v66, %v740
    %745 = vst [vmem:[#allocation2] sm:$0xff] %v743
    %746 = vst [vmem:[#allocation2 + $0x8] sm:$0xff] %v744
    // Predicated region
    $region30: #{forward.1} parent=1 // pred_check
      %p747 = pneg %p35
    $region31: #{forward.1} parent=1 // pred_check_branch
      %749 = sbr.rel (%p747) target = $region33
    $region32: #{forward.1} parent=1 // pred_region
      %v750 = vld [vmem:[#allocation2] sm:$0xff]
      %v751 = vld [vmem:[#allocation2 + $0x8] sm:$0xff]
      %v752 = vld [vmem:[%s2] sm:$0x1]
      %v754 = vlaneseq
      %v755 = vshrl.u32 %v754, 7
      %v756 = vsub.s32 0, %v755
      %v757 = vrot.slane %v752, %v756
      %v759 = vadd.f32 %v750, %v757
      %v760 = vadd.f32 %v751, %v757
      %v761 = vmax.f32 %v759, 0.0
      %v762 = vmax.f32 %v760, 0.0
      %v763 = vpack.c.bf16 %v762, %v761
      %v764 = vld [vmem:[%s3] sm:$0xf]
      %v765 = vld [vmem:[%s3 + $0x4] sm:$0xf]
      %v766 = vld [vmem:[%s3 + $0x8] sm:$0xf]
      %v767 = vld [vmem:[%s3 + $0xc] sm:$0xf]
      %v768 = vld [vmem:[%s3 + $0x10] sm:$0xf]
      %v769 = vld [vmem:[%s3 + $0x14] sm:$0xf]
      %v770 = vld [vmem:[%s3 + $0x18] sm:$0xf]
      %v771 = vld [vmem:[%s3 + $0x1c] sm:$0xf]
      %v772 = vld [vmem:[%s3 + $0x20] sm:$0xf]
      %v773 = vld [vmem:[%s3 + $0x24] sm:$0xf]
      %v774 = vld [vmem:[%s3 + $0x28] sm:$0xf]
      %v775 = vld [vmem:[%s3 + $0x2c] sm:$0xf]
      %v776 = vld [vmem:[%s3 + $0x30] sm:$0xf]
      %v777 = vld [vmem:[%s3 + $0x34] sm:$0xf]
      %v778 = vld [vmem:[%s3 + $0x38] sm:$0xf]
      %v779 = vld [vmem:[%s3 + $0x3c] sm:$0xf]
      %v780 = vld [vmem:[%s4] sm:$0x1]
      %v782 = vlaneseq
      %v783 = vshrl.u32 %v782, 7
      %v784 = vsub.s32 0, %v783
      %v785 = vrot.slane %v780, %v784
      %v803 = vunpack.c.l.b16 %v764
      %v804 = vunpack.c.l.b16 %v765
      %v805 = vunpack.c.l.b16 %v766
      %v806 = vunpack.c.l.b16 %v767
      %v807 = vunpack.c.l.b16 %v768
      %v808 = vunpack.c.l.b16 %v769
      %v809 = vunpack.c.l.b16 %v770
      %v810 = vunpack.c.l.b16 %v771
      %v811 = vunpack.c.l.b16 %v772
      %v812 = vunpack.c.l.b16 %v773
      %v813 = vunpack.c.l.b16 %v774
      %v814 = vunpack.c.l.b16 %v775
      %v815 = vunpack.c.l.b16 %v776
      %v816 = vunpack.c.l.b16 %v777
      %v817 = vunpack.c.l.b16 %v778
      %v818 = vunpack.c.l.b16 %v779
      %v819 = vpack.c.b16 %v804, %v803
      %v820 = vpack.c.b16 %v806, %v805
      %v821 = vpack.c.b16 %v808, %v807
      %v822 = vpack.c.b16 %v810, %v809
      %v823 = vpack.c.b16 %v812, %v811
      %v824 = vpack.c.b16 %v814, %v813
      %v825 = vpack.c.b16 %v816, %v815
      %v826 = vpack.c.b16 %v818, %v817
      %835 = vmatprep.subr.bf16.mxu0 0
      %836 = vmatpush1.bf16.msra.mxu0 %v826
      %837 = vmatprep.subr.bf16.mxu0 0
      %838 = vmatpush1.bf16.msra.mxu0 %v825
      %839 = vmatprep.subr.bf16.mxu0 0
      %840 = vmatpush1.bf16.msra.mxu0 %v824
      %841 = vmatprep.subr.bf16.mxu0 0
      %842 = vmatpush1.bf16.msra.mxu0 %v823
      %843 = vmatprep.subr.bf16.mxu0 0
      %844 = vmatpush1.bf16.msra.mxu0 %v822
      %845 = vmatprep.subr.bf16.mxu0 0
      %846 = vmatpush1.bf16.msra.mxu0 %v821
      %847 = vmatprep.subr.bf16.mxu0 0
      %848 = vmatpush1.bf16.msra.mxu0 %v820
      %849 = vmatprep.subr.bf16.mxu0 0
      %850 = vmatpush1.bf16.msra.mxu0 %v819
      %851 = vmatprep.subr.bf16.mxu0 0
      %852 = vmatpush2.bf16.msra.mxu0 0
      %853 = vmatprep.subr.bf16.mxu0 0
      %854 = vmatpush2.bf16.msra.mxu0 0
      %855 = vmatprep.subr.bf16.mxu0 0
      %856 = vmatpush2.bf16.msra.mxu0 0
      %857 = vmatprep.subr.bf16.mxu0 0
      %858 = vmatpush2.bf16.msra.mxu0 0
      %859 = vmatprep.subr.bf16.mxu0 0
      %860 = vmatpush2.bf16.msra.mxu0 0
      %861 = vmatprep.subr.bf16.mxu0 0
      %862 = vmatpush2.bf16.msra.mxu0 0
      %863 = vmatprep.subr.bf16.mxu0 0
      %864 = vmatpush2.bf16.msra.mxu0 0
      %865 = vmatprep.subr.bf16.mxu0 0
      %866 = vmatpush2.bf16.msra.mxu0 0
      %867 = vmatprep.mubr.bf16.mxu0 0
      %868 = vmatmul.mubr.bf16.gmra.mxu0 %v763
      %v869 = vpop.f32.mrf.mxu0
      %v870 = vadd.f32 %v785, %v869
      %v871 = vpop.f32.mrf.mxu0
      %v872 = vpop.f32.mrf.mxu0
      %v873 = vadd.f32 %v785, %v872
      %v874 = vpop.f32.mrf.mxu0
      %875 = vdwg.mxu0
      %v876 = vtanh.pop %v870
      %v877 = vtanh.pop %v873
      %878 = vst [vmem:[%s5] sm:$0xff] %v876
      %879 = vst [vmem:[%s5 + $0x8] sm:$0xff] %v877
    $region33: #{forward.1} parent=1 // pred_fallthru
      _
    // Predicated region
    $region34: #{forward.1} parent=1 // pred_check
      _
    $region35: #{forward.1} parent=1 // pred_check_branch
      %881 = sbr.rel (0) target = $region37
    $region36: #{forward.1} parent=1 // pred_region
      _
    $region37: #{forward.1} parent=1 // pred_fallthru
      _
    // Predicated region
    $region38: #{forward.1} parent=1 // pred_check
      _
    $region39: #{forward.1} parent=1 // pred_check_branch
      %883 = sbr.rel (0) target = $region41
    $region40: #{forward.1} parent=1 // pred_region
      _
    $region41: #{forward.1} parent=1 // pred_fallthru
      _
    %884 = vsyncpa [#allocation4], 1

</llo_original>
